<compile_context>
chip_gen: v7x
topology: tpu7x:2x2x1
jax: 0.10.0
libtpu: 0.0.40
codegen_flags: <defaults>
</compile_context>

<pallas_src>
import jax
import jax.numpy as jnp
from jax.experimental import pallas as pl
from jax.experimental.pallas import tpu as pltpu

SELU_SCALE = 1.0507009873554804934193349852946
SELU_ALPHA = 1.6732632423543772848170429916717


def _selu(x):
    # Clamp the exp argument so the unselected (positive) branch never produces inf.
    return SELU_SCALE * jnp.where(
        x > 0, x, SELU_ALPHA * (jnp.exp(jnp.minimum(x, 0.0)) - 1.0))


def _round_up(x, m):
    return ((x + m - 1) // m) * m


def _mlp_tail(e, flr_g, fhr,
              w1e_ref, w1f_ref, w1h_ref, b1_ref,
              w2_ref, b2_ref, w3_ref, b3_ref, o_ref):
    """Shared 3-layer SELU MLP body; layer-1 split over the concat pieces."""
    cdt = w2_ref.dtype  # compute dtype fed to the MXU (f32 or bf16)
    h = (jnp.dot(e, w1e_ref[...], preferred_element_type=jnp.float32)
         + jnp.dot(flr_g.astype(cdt), w1f_ref[...], preferred_element_type=jnp.float32)
         + jnp.dot(fhr, w1h_ref[...], preferred_element_type=jnp.float32)
         + b1_ref[...])
    h = _selu(h)
    h = _selu(jnp.dot(h.astype(cdt), w2_ref[...],
                      preferred_element_type=jnp.float32) + b2_ref[...])
    # layer 3: no activation (activation=None branch of UpMP.forward)
    out = jnp.dot(h.astype(cdt), w3_ref[...],
                  preferred_element_type=jnp.float32) + b3_ref[...]
    o_ref[...] = out.astype(o_ref.dtype)


def up_mlp_kernel_fused(idx_ref, e_ref, flr_ref, fhr_ref,
                        w1e_ref, w1f_ref, w1h_ref, b1_ref,
                        w2_ref, b2_ref, w3_ref, b3_ref, o_ref):
    """One tile of HR nodes: in-kernel LR-field gather (one-hot matmul) + MLP."""
    tile_n = e_ref.shape[0]
    n_lr = flr_ref.shape[0]
    cdt = w2_ref.dtype

    idx = idx_ref[...]                                              # (tile_n, 1) int32
    lr_iota = jax.lax.broadcasted_iota(jnp.int32, (tile_n, n_lr), 1)
    onehot = (lr_iota == idx).astype(cdt)                           # (tile_n, n_lr)
    flr_g = jnp.dot(onehot, flr_ref[...],
                    preferred_element_type=jnp.float32)             # gathered rows, f32

    _mlp_tail(e_ref[...], flr_g, fhr_ref[...],
              w1e_ref, w1f_ref, w1h_ref, b1_ref,
              w2_ref, b2_ref, w3_ref, b3_ref, o_ref)


def up_mlp_kernel_pregather(e_ref, flrg_ref, fhr_ref,
                            w1e_ref, w1f_ref, w1h_ref, b1_ref,
                            w2_ref, b2_ref, w3_ref, b3_ref, o_ref):
    """One tile of HR nodes: LR field already gathered (streamed per tile) + MLP."""
    _mlp_tail(e_ref[...], flrg_ref[...], fhr_ref[...],
              w1e_ref, w1f_ref, w1h_ref, b1_ref,
              w2_ref, b2_ref, w3_ref, b3_ref, o_ref)


def up_mp_forward(e, field_lr, idx_hr_to_lr, field_hr_old, params, *,
                  tile_n=512, compute_dtype=jnp.float32,
                  fuse_gather="auto", fused_gather_max_lr=256):
    """UpMP.forward semantics (activation=None): returns the new HR field.

    graph.pos = pos_hr in the reference module is a pure attribute swap (no compute).
    """
    w1, b1, w2, b2, w3, b3 = params
    n, e_dim = e.shape
    n_lr, f_dim = field_lr.shape
    h1, h2, d_out = w1.shape[1], w2.shape[1], w3.shape[1]
    out_dtype = field_hr_old.dtype

    # Fold -e into the first slice of w1; split w1 so the concatenated activation
    # is never materialized.
    w1e = -w1[:e_dim, :]
    w1f = w1[e_dim:e_dim + f_dim, :]
    w1h = w1[e_dim + f_dim:, :]

    # Gather strategy: fuse only when the LR table is small enough that keeping it
    # VMEM-resident and paying the one-hot (tile, n_lr) matmul is clearly cheap.
    if fuse_gather == "auto":
        fuse = n_lr <= fused_gather_max_lr
    else:
        fuse = bool(fuse_gather)

    # Row tiling: large tiles amortize the ~0.35 us per-grid-step overhead; cap at the
    # 8-aligned node count so small problems don't over-pad. (On v5e prefer 256-512.)
    tile = max(8, min(int(tile_n), _round_up(n, 8)))
    tile = _round_up(tile, 8)
    n_pad = pl.cdiv(n, tile) * tile
    grid = (n_pad // tile,)
    pad = n_pad - n

    idx = idx_hr_to_lr.astype(jnp.int32)
    cdt = compute_dtype

    flr_gathered = None
    if not fuse:
        # Memory-bound XLA gather once, outside the kernel (scales to huge LR graphs).
        flr_gathered = jnp.take(field_lr, idx, axis=0).astype(cdt)

    if pad:
        e = jnp.pad(e, ((0, pad), (0, 0)))
        field_hr_old = jnp.pad(field_hr_old, ((0, pad), (0, 0)))
        idx = jnp.pad(idx, (0, pad))          # idx 0 is a valid (discarded) gather
        if flr_gathered is not None:
            flr_gathered = jnp.pad(flr_gathered, ((0, pad), (0, 0)))

    e_c = e.astype(cdt)
    fhr_c = field_hr_old.astype(cdt)
    flr_c = field_lr.astype(cdt)
    w1e_c, w1f_c, w1h_c = (w.astype(cdt) for w in (w1e, w1f, w1h))
    w2_c, w3_c = w2.astype(cdt), w3.astype(cdt)
    b1_c, b2_c, b3_c = (b.astype(jnp.float32) for b in (b1, b2, b3))

    def full(arr):
        # Weights / biases / LR-field table: one full-array block, resident every step.
        return pl.BlockSpec(arr.shape, lambda i: (0,) * arr.ndim)

    def rows(width):
        return pl.BlockSpec((tile, width), lambda i: (i, 0))

    weight_ops = (w1e_c, w1f_c, w1h_c, b1_c, w2_c, b2_c, w3_c, b3_c)
    weight_specs = [full(a) for a in weight_ops]

    if fuse:
        kernel = up_mlp_kernel_fused
        idx2d = idx.reshape(n_pad, 1)
        operands = (idx2d, e_c, flr_c, fhr_c) + weight_ops
        in_specs = [rows(1), rows(e_dim), full(flr_c), rows(f_dim)] + weight_specs
        gather_flops = 2 * n_pad * n_lr * f_dim
    else:
        kernel = up_mlp_kernel_pregather
        operands = (e_c, flr_gathered, fhr_c) + weight_ops
        in_specs = [rows(e_dim), rows(f_dim), rows(f_dim)] + weight_specs
        gather_flops = 0

    flops = (gather_flops
             + 2 * n_pad * ((e_dim + 2 * f_dim) * h1 + h1 * h2 + h2 * d_out))
    transcendentals = n_pad * (h1 + h2)                     # one exp per SELU element
    bytes_accessed = int(sum(op.nbytes for op in operands)
                         + n_pad * d_out * jnp.dtype(out_dtype).itemsize)

    out = pl.pallas_call(
        kernel,
        out_shape=jax.ShapeDtypeStruct((n_pad, d_out), out_dtype),
        grid=grid,
        in_specs=in_specs,
        out_specs=pl.BlockSpec((tile, d_out), lambda i: (i, 0)),
        compiler_params=pltpu.CompilerParams(
            dimension_semantics=("parallel",)),
        cost_estimate=pl.CostEstimate(
            flops=int(flops),
            transcendentals=int(transcendentals),
            bytes_accessed=bytes_accessed),
    )(*operands)
    return out[:n]


def init_mlp_params(key, input_size, layers_width):
    """Deterministic synthetic init matching MLP(input_size, layers_width) shapes."""
    sizes = [input_size] + list(layers_width)
    params = []
    for i in range(len(sizes) - 1):
        key, kw, kb = jax.random.split(key, 3)
        fan_in = sizes[i]
        w = jax.random.uniform(kw, (sizes[i], sizes[i + 1]), jnp.float32,
                               -1.0, 1.0) / jnp.sqrt(jnp.float32(fan_in))
        b = jax.random.uniform(kb, (1, sizes[i + 1]), jnp.float32,
                               -1.0, 1.0) / jnp.sqrt(jnp.float32(fan_in))
        params += [w, b]
    return params


def reference_forward(e, field_lr, idx_hr_to_lr, field_hr_old, params):
    w1, b1, w2, b2, w3, b3 = params
    x = jnp.concatenate([-e, field_lr[idx_hr_to_lr], field_hr_old], axis=-1)
    h = _selu(x @ w1 + b1)
    h = _selu(h @ w2 + b2)
    return h @ w3 + b3


if __name__ == "__main__":
    # Small shapes consistent with the module:
    #   N_hr = 64 high-res nodes, N_lr = 16 low-res nodes,
    #   edge features e: 2 (relative positions), field width: 16, hidden: 32.
    N_HR, N_LR = 64, 16
    E_DIM, F_DIM, HIDDEN, OUT = 2, 16, 32, 16
    input_size = E_DIM + 2 * F_DIM  # 34

    key = jax.random.PRNGKey(0)
    k_e, k_flr, k_fhr, k_idx, k_params, k_pos = jax.random.split(key, 6)

    e = jax.random.normal(k_e, (N_HR, E_DIM), jnp.float32)              # e_{hr}{lr}
    field_lr = jax.random.normal(k_flr, (N_LR, F_DIM), jnp.float32)     # graph.field (LR)
    field_hr_old = jax.random.normal(k_fhr, (N_HR, F_DIM), jnp.float32) # skip connection
    idx_hr_to_lr = jax.random.randint(k_idx, (N_HR,), 0, N_LR, jnp.int32)
    pos_hr = jax.random.normal(k_pos, (N_HR, 2), jnp.float32)  # attribute swap only

    params = init_mlp_params(k_params, input_size, (HIDDEN, HIDDEN, OUT))
    ref = reference_forward(e, field_lr, idx_hr_to_lr, field_hr_old, params)

    # f32, fused in-kernel gather path (exact check vs reference).
    out = jax.block_until_ready(
        up_mp_forward(e, field_lr, idx_hr_to_lr, field_hr_old, params))
    assert out.shape == (N_HR, OUT)
    assert jnp.allclose(out, ref, atol=1e-4, rtol=1e-4)

    # Ragged node count + explicit pre-gather path (XLA gather, streamed rows).
    N2 = 72
    k2e, k2f, k2i = jax.random.split(jax.random.PRNGKey(1), 3)
    e2 = jax.random.normal(k2e, (N2, E_DIM), jnp.float32)
    fhr2 = jax.random.normal(k2f, (N2, F_DIM), jnp.float32)
    idx2 = jax.random.randint(k2i, (N2,), 0, N_LR, jnp.int32)
    out2 = jax.block_until_ready(
        up_mp_forward(e2, field_lr, idx2, fhr2, params,
                      tile_n=32, fuse_gather=False))
    ref2 = reference_forward(e2, field_lr, idx2, fhr2, params)
    assert out2.shape == (N2, OUT)
    assert jnp.allclose(out2, ref2, atol=1e-4, rtol=1e-4)

    # bf16 activation/weight path (bandwidth win on v6e/v7x); loose numeric sanity check.
    out_bf16 = jax.block_until_ready(
        up_mp_forward(e, field_lr, idx_hr_to_lr, field_hr_old, params,
                      compute_dtype=jnp.bfloat16))
    assert out_bf16.shape == (N_HR, OUT)
    assert bool(jnp.all(jnp.isfinite(out_bf16)))
    assert float(jnp.max(jnp.abs(out_bf16 - ref))) < 0.5

    # graph.pos = pos_hr is a pure attribute swap; activation=None branch taken.
    del pos_hr
    print("KERNEL_OK")
</pallas_src>

<mosaic_0001>
module attributes {stable_mosaic.version = 11 : i64} {
  func.func @up_mlp_kernel_fused(%arg0: i32, %arg1: memref<64x1xi32, #tpu.memory_space<vmem>>, %arg2: memref<64x2xf32, #tpu.memory_space<vmem>>, %arg3: memref<16x16xf32, #tpu.memory_space<vmem>>, %arg4: memref<64x16xf32, #tpu.memory_space<vmem>>, %arg5: memref<2x32xf32, #tpu.memory_space<vmem>>, %arg6: memref<16x32xf32, #tpu.memory_space<vmem>>, %arg7: memref<16x32xf32, #tpu.memory_space<vmem>>, %arg8: memref<1x32xf32, #tpu.memory_space<vmem>>, %arg9: memref<32x32xf32, #tpu.memory_space<vmem>>, %arg10: memref<1x32xf32, #tpu.memory_space<vmem>>, %arg11: memref<32x16xf32, #tpu.memory_space<vmem>>, %arg12: memref<1x16xf32, #tpu.memory_space<vmem>>, %arg13: memref<64x16xf32, #tpu.memory_space<vmem>>) attributes {dimension_semantics = [#tpu.dimension_semantics<parallel>], iteration_bounds = array<i64: 1>, scalar_prefetch = 0 : i64, scratch_operands = 0 : i64, tpu.core_type = #tpu.core_type<tc>, window_params = [{transform_indices = @transform_0, window_bounds = array<i64: 64, 1>}, {transform_indices = @transform_1, window_bounds = array<i64: 64, 2>}, {pipeline_mode = #tpu.pipeline_mode<synchronous>, transform_indices = @transform_2, window_bounds = array<i64: 16, 16>}, {transform_indices = @transform_3, window_bounds = array<i64: 64, 16>}, {pipeline_mode = #tpu.pipeline_mode<synchronous>, transform_indices = @transform_4, window_bounds = array<i64: 2, 32>}, {pipeline_mode = #tpu.pipeline_mode<synchronous>, transform_indices = @transform_5, window_bounds = array<i64: 16, 32>}, {pipeline_mode = #tpu.pipeline_mode<synchronous>, transform_indices = @transform_6, window_bounds = array<i64: 16, 32>}, {pipeline_mode = #tpu.pipeline_mode<synchronous>, transform_indices = @transform_7, window_bounds = array<i64: 1, 32>}, {pipeline_mode = #tpu.pipeline_mode<synchronous>, transform_indices = @transform_8, window_bounds = array<i64: 32, 32>}, {pipeline_mode = #tpu.pipeline_mode<synchronous>, transform_indices = @transform_9, window_bounds = array<i64: 1, 32>}, {pipeline_mode = #tpu.pipeline_mode<synchronous>, transform_indices = @transform_10, window_bounds = array<i64: 32, 16>}, {pipeline_mode = #tpu.pipeline_mode<synchronous>, transform_indices = @transform_11, window_bounds = array<i64: 1, 16>}, {transform_indices = @transform_12, window_bounds = array<i64: 64, 16>}]} {
    %c0 = arith.constant 0 : index
    %c0_0 = arith.constant 0 : index
    %0 = vector.load %arg1[%c0, %c0_0] : memref<64x1xi32, #tpu.memory_space<vmem>>, vector<64x1xi32>
    %1 = tpu.iota {dimensions = array<i32: 1>} : vector<64x16xi32>
    %2 = vector.broadcast %0 : vector<64x1xi32> to vector<64x16xi32>
    %3 = arith.cmpi eq, %1, %2 : vector<64x16xi32>
    %4 = arith.extui %3 : vector<64x16xi1> to vector<64x16xi32>
    %5 = arith.sitofp %4 : vector<64x16xi32> to vector<64x16xf32>
    %c0_1 = arith.constant 0 : index
    %c0_2 = arith.constant 0 : index
    %6 = vector.load %arg3[%c0_1, %c0_2] : memref<16x16xf32, #tpu.memory_space<vmem>>, vector<16x16xf32>
    %cst = arith.constant dense<0.000000e+00> : vector<64x16xf32>
    %7 = tpu.matmul %5, %6, %cst {dimension_numbers = #tpu.dot_dimension_numbers<[1], [0], [0], [1], [0, 0, 1, 1], [], []>} : vector<64x16xf32>, vector<16x16xf32>, vector<64x16xf32> -> vector<64x16xf32>
    %c0_3 = arith.constant 0 : index
    %c0_4 = arith.constant 0 : index
    %8 = vector.load %arg2[%c0_3, %c0_4] : memref<64x2xf32, #tpu.memory_space<vmem>>, vector<64x2xf32>
    %c0_5 = arith.constant 0 : index
    %c0_6 = arith.constant 0 : index
    %9 = vector.load %arg4[%c0_5, %c0_6] : memref<64x16xf32, #tpu.memory_space<vmem>>, vector<64x16xf32>
    %c0_7 = arith.constant 0 : index
    %c0_8 = arith.constant 0 : index
    %10 = vector.load %arg5[%c0_7, %c0_8] : memref<2x32xf32, #tpu.memory_space<vmem>>, vector<2x32xf32>
    %cst_9 = arith.constant dense<0.000000e+00> : vector<64x32xf32>
    %11 = tpu.matmul %8, %10, %cst_9 {dimension_numbers = #tpu.dot_dimension_numbers<[1], [0], [0], [1], [0, 0, 1, 1], [], []>} : vector<64x2xf32>, vector<2x32xf32>, vector<64x32xf32> -> vector<64x32xf32>
    %c0_10 = arith.constant 0 : index
    %c0_11 = arith.constant 0 : index
    %12 = vector.load %arg6[%c0_10, %c0_11] : memref<16x32xf32, #tpu.memory_space<vmem>>, vector<16x32xf32>
    %cst_12 = arith.constant dense<0.000000e+00> : vector<64x32xf32>
    %13 = tpu.matmul %7, %12, %cst_12 {dimension_numbers = #tpu.dot_dimension_numbers<[1], [0], [0], [1], [0, 0, 1, 1], [], []>} : vector<64x16xf32>, vector<16x32xf32>, vector<64x32xf32> -> vector<64x32xf32>
    %14 = arith.addf %11, %13 : vector<64x32xf32>
    %c0_13 = arith.constant 0 : index
    %c0_14 = arith.constant 0 : index
    %15 = vector.load %arg7[%c0_13, %c0_14] : memref<16x32xf32, #tpu.memory_space<vmem>>, vector<16x32xf32>
    %cst_15 = arith.constant dense<0.000000e+00> : vector<64x32xf32>
    %16 = tpu.matmul %9, %15, %cst_15 {dimension_numbers = #tpu.dot_dimension_numbers<[1], [0], [0], [1], [0, 0, 1, 1], [], []>} : vector<64x16xf32>, vector<16x32xf32>, vector<64x32xf32> -> vector<64x32xf32>
    %17 = arith.addf %14, %16 : vector<64x32xf32>
    %c0_16 = arith.constant 0 : index
    %c0_17 = arith.constant 0 : index
    %18 = vector.load %arg8[%c0_16, %c0_17] : memref<1x32xf32, #tpu.memory_space<vmem>>, vector<1x32xf32>
    %19 = vector.broadcast %18 : vector<1x32xf32> to vector<64x32xf32>
    %20 = arith.addf %17, %19 : vector<64x32xf32>
    %cst_18 = arith.constant 0.000000e+00 : f32
    %21 = vector.broadcast %cst_18 : f32 to vector<64x32xf32>
    %22 = arith.cmpf ogt, %20, %21 : vector<64x32xf32>
    %cst_19 = arith.constant 0.000000e+00 : f32
    %23 = vector.broadcast %cst_19 : f32 to vector<64x32xf32>
    %24 = arith.minimumf %20, %23 : vector<64x32xf32>
    %25 = math.exp %24 : vector<64x32xf32>
    %cst_20 = arith.constant 1.000000e+00 : f32
    %26 = vector.broadcast %cst_20 : f32 to vector<64x32xf32>
    %27 = arith.subf %25, %26 : vector<64x32xf32>
    %cst_21 = arith.constant 1.67326319 : f32
    %28 = vector.broadcast %cst_21 : f32 to vector<64x32xf32>
    %29 = arith.mulf %28, %27 : vector<64x32xf32>
    %30 = arith.select %22, %20, %29 : vector<64x32xi1>, vector<64x32xf32>
    %cst_22 = arith.constant 1.05070102 : f32
    %31 = vector.broadcast %cst_22 : f32 to vector<64x32xf32>
    %32 = arith.mulf %31, %30 : vector<64x32xf32>
    %c0_23 = arith.constant 0 : index
    %c0_24 = arith.constant 0 : index
    %33 = vector.load %arg9[%c0_23, %c0_24] : memref<32x32xf32, #tpu.memory_space<vmem>>, vector<32x32xf32>
    %cst_25 = arith.constant dense<0.000000e+00> : vector<64x32xf32>
    %34 = tpu.matmul %32, %33, %cst_25 {dimension_numbers = #tpu.dot_dimension_numbers<[1], [0], [0], [1], [0, 0, 1, 1], [], []>} : vector<64x32xf32>, vector<32x32xf32>, vector<64x32xf32> -> vector<64x32xf32>
    %c0_26 = arith.constant 0 : index
    %c0_27 = arith.constant 0 : index
    %35 = vector.load %arg10[%c0_26, %c0_27] : memref<1x32xf32, #tpu.memory_space<vmem>>, vector<1x32xf32>
    %36 = vector.broadcast %35 : vector<1x32xf32> to vector<64x32xf32>
    %37 = arith.addf %34, %36 : vector<64x32xf32>
    %cst_28 = arith.constant 0.000000e+00 : f32
    %38 = vector.broadcast %cst_28 : f32 to vector<64x32xf32>
    %39 = arith.cmpf ogt, %37, %38 : vector<64x32xf32>
    %cst_29 = arith.constant 0.000000e+00 : f32
    %40 = vector.broadcast %cst_29 : f32 to vector<64x32xf32>
    %41 = arith.minimumf %37, %40 : vector<64x32xf32>
    %42 = math.exp %41 : vector<64x32xf32>
    %cst_30 = arith.constant 1.000000e+00 : f32
    %43 = vector.broadcast %cst_30 : f32 to vector<64x32xf32>
    %44 = arith.subf %42, %43 : vector<64x32xf32>
    %cst_31 = arith.constant 1.67326319 : f32
    %45 = vector.broadcast %cst_31 : f32 to vector<64x32xf32>
    %46 = arith.mulf %45, %44 : vector<64x32xf32>
    %47 = arith.select %39, %37, %46 : vector<64x32xi1>, vector<64x32xf32>
    %cst_32 = arith.constant 1.05070102 : f32
    %48 = vector.broadcast %cst_32 : f32 to vector<64x32xf32>
    %49 = arith.mulf %48, %47 : vector<64x32xf32>
    %c0_33 = arith.constant 0 : index
    %c0_34 = arith.constant 0 : index
    %50 = vector.load %arg11[%c0_33, %c0_34] : memref<32x16xf32, #tpu.memory_space<vmem>>, vector<32x16xf32>
    %cst_35 = arith.constant dense<0.000000e+00> : vector<64x16xf32>
    %51 = tpu.matmul %49, %50, %cst_35 {dimension_numbers = #tpu.dot_dimension_numbers<[1], [0], [0], [1], [0, 0, 1, 1], [], []>} : vector<64x32xf32>, vector<32x16xf32>, vector<64x16xf32> -> vector<64x16xf32>
    %c0_36 = arith.constant 0 : index
    %c0_37 = arith.constant 0 : index
    %52 = vector.load %arg12[%c0_36, %c0_37] : memref<1x16xf32, #tpu.memory_space<vmem>>, vector<1x16xf32>
    %53 = vector.broadcast %52 : vector<1x16xf32> to vector<64x16xf32>
    %54 = arith.addf %51, %53 : vector<64x16xf32>
    %c0_38 = arith.constant 0 : index
    %c0_39 = arith.constant 0 : index
    %55 = vector.load %arg13[%c0_38, %c0_39] : memref<64x16xf32, #tpu.memory_space<vmem>>, vector<64x16xf32>
    tpu.vector_store %arg13[%c0_38, %c0_39], %54 {strides = array<i32>} : memref<64x16xf32, #tpu.memory_space<vmem>>, vector<64x16xf32>,
    return
  }
  func.func @transform_0(%arg0: i32) -> (i32, i32) {
    %c0_i32 = arith.constant 0 : i32
    %c0_i32_0 = arith.constant 0 : i32
    return %arg0, %c0_i32 : i32, i32
  }
  func.func @transform_1(%arg0: i32) -> (i32, i32) {
    %c0_i32 = arith.constant 0 : i32
    %c0_i32_0 = arith.constant 0 : i32
    return %arg0, %c0_i32 : i32, i32
  }
  func.func @transform_2(%arg0: i32) -> (i32, i32) {
    %c0_i32 = arith.constant 0 : i32
    %c0_i32_0 = arith.constant 0 : i32
    %c0_i32_1 = arith.constant 0 : i32
    return %c0_i32, %c0_i32_0 : i32, i32
  }
  func.func @transform_3(%arg0: i32) -> (i32, i32) {
    %c0_i32 = arith.constant 0 : i32
    %c0_i32_0 = arith.constant 0 : i32
    return %arg0, %c0_i32 : i32, i32
  }
  func.func @transform_4(%arg0: i32) -> (i32, i32) {
    %c0_i32 = arith.constant 0 : i32
    %c0_i32_0 = arith.constant 0 : i32
    %c0_i32_1 = arith.constant 0 : i32
    return %c0_i32, %c0_i32_0 : i32, i32
  }
  func.func @transform_5(%arg0: i32) -> (i32, i32) {
    %c0_i32 = arith.constant 0 : i32
    %c0_i32_0 = arith.constant 0 : i32
    %c0_i32_1 = arith.constant 0 : i32
    return %c0_i32, %c0_i32_0 : i32, i32
  }
  func.func @transform_6(%arg0: i32) -> (i32, i32) {
    %c0_i32 = arith.constant 0 : i32
    %c0_i32_0 = arith.constant 0 : i32
    %c0_i32_1 = arith.constant 0 : i32
    return %c0_i32, %c0_i32_0 : i32, i32
  }
  func.func @transform_7(%arg0: i32) -> (i32, i32) {
    %c0_i32 = arith.constant 0 : i32
    %c0_i32_0 = arith.constant 0 : i32
    %c0_i32_1 = arith.constant 0 : i32
    return %c0_i32, %c0_i32_0 : i32, i32
  }
  func.func @transform_8(%arg0: i32) -> (i32, i32) {
    %c0_i32 = arith.constant 0 : i32
    %c0_i32_0 = arith.constant 0 : i32
    %c0_i32_1 = arith.constant 0 : i32
    return %c0_i32, %c0_i32_0 : i32, i32
  }
  func.func @transform_9(%arg0: i32) -> (i32, i32) {
    %c0_i32 = arith.constant 0 : i32
    %c0_i32_0 = arith.constant 0 : i32
    %c0_i32_1 = arith.constant 0 : i32
    return %c0_i32, %c0_i32_0 : i32, i32
  }
  func.func @transform_10(%arg0: i32) -> (i32, i32) {
    %c0_i32 = arith.constant 0 : i32
    %c0_i32_0 = arith.constant 0 : i32
    %c0_i32_1 = arith.constant 0 : i32
    return %c0_i32, %c0_i32_0 : i32, i32
  }
  func.func @transform_11(%arg0: i32) -> (i32, i32) {
    %c0_i32 = arith.constant 0 : i32
    %c0_i32_0 = arith.constant 0 : i32
    %c0_i32_1 = arith.constant 0 : i32
    return %c0_i32, %c0_i32_0 : i32, i32
  }
  func.func @transform_12(%arg0: i32) -> (i32, i32) {
    %c0_i32 = arith.constant 0 : i32
    %c0_i32_0 = arith.constant 0 : i32
    return %arg0, %c0_i32 : i32, i32
  }
}

</mosaic_0001>

<llo_original>
// kernel: tpu_custom_call.1
$region0: #{tpu_custom_call.1}
  #allocation0 [shape = 'u32[]', space=smem, size = 0x4, offset = 0x4, fixed_abs, tag = 'smem constant byte address 0x4 - core index']
  #allocation1 [shape = 'u32[144,128]{1,0:T(1,128)}', space=vmem, size = 0x12000, scoped, tag = 'internal scratch']
  %s0 = inlined_call_operand.vmem [shape: s32[64,1], index: 0, kind: input, shape index: {}]
  %s1 = inlined_call_operand.vmem [shape: f32[64,2], index: 1, kind: input, shape index: {}]
  %s2 = inlined_call_operand.vmem [shape: f32[16,16], index: 2, kind: input, shape index: {}]
  %s3 = inlined_call_operand.vmem [shape: f32[64,16], index: 3, kind: input, shape index: {}]
  %s4 = inlined_call_operand.vmem [shape: f32[2,32], index: 4, kind: input, shape index: {}]
  %s5 = inlined_call_operand.vmem [shape: f32[16,32], index: 5, kind: input, shape index: {}]
  %s6 = inlined_call_operand.vmem [shape: f32[16,32], index: 6, kind: input, shape index: {}]
  %s7 = inlined_call_operand.vmem [shape: f32[1,32], index: 7, kind: input, shape index: {}]
  %s8 = inlined_call_operand.vmem [shape: f32[32,32], index: 8, kind: input, shape index: {}]
  %s9 = inlined_call_operand.vmem [shape: f32[1,32], index: 9, kind: input, shape index: {}]
  %s10 = inlined_call_operand.vmem [shape: f32[32,16], index: 10, kind: input, shape index: {}]
  %s11 = inlined_call_operand.vmem [shape: f32[1,16], index: 11, kind: input, shape index: {}]
  %s12 = inlined_call_operand.vmem [shape: f32[64,16], index: 12, kind: output, shape index: {}]
  %s13 = sld [smem:[#allocation0]]
  $region58: #{tpu_custom_call.1} parent=0
    _
  %s15 = ssub.s32 1, %s13
  %s16 = scalar_select 0, %s15, %s13
  // Predicated region
  $region2: #{tpu_custom_call.1} parent=0 // pred_check
    _
  $region3: #{tpu_custom_call.1} parent=0 // pred_check_branch
    %18 = sbr.rel (0) target = $region5
  $region4: #{tpu_custom_call.1} parent=0 // pred_region
    _
  $region5: #{tpu_custom_call.1} parent=0 // pred_fallthru
    _
  // Predicated region
  $region6: #{tpu_custom_call.1} parent=0 // pred_check
    _
  $region7: #{tpu_custom_call.1} parent=0 // pred_check_branch
    %20 = sbr.rel (0) target = $region9
  $region8: #{tpu_custom_call.1} parent=0 // pred_region
    _
  $region9: #{tpu_custom_call.1} parent=0 // pred_fallthru
    _
  // Predicated region
  $region10: #{tpu_custom_call.1} parent=0 // pred_check
    _
  $region11: #{tpu_custom_call.1} parent=0 // pred_check_branch
    %22 = sbr.rel (0) target = $region13
  $region12: #{tpu_custom_call.1} parent=0 // pred_region
    _
  $region13: #{tpu_custom_call.1} parent=0 // pred_fallthru
    _
  // Predicated region
  $region14: #{tpu_custom_call.1} parent=0 // pred_check
    _
  $region15: #{tpu_custom_call.1} parent=0 // pred_check_branch
    %24 = sbr.rel (0) target = $region17
  $region16: #{tpu_custom_call.1} parent=0 // pred_region
    _
  $region17: #{tpu_custom_call.1} parent=0 // pred_fallthru
    _
  // Predicated region
  $region18: #{tpu_custom_call.1} parent=0 // pred_check
    _
  $region19: #{tpu_custom_call.1} parent=0 // pred_check_branch
    %26 = sbr.rel (0) target = $region21
  $region20: #{tpu_custom_call.1} parent=0 // pred_region
    _
  $region21: #{tpu_custom_call.1} parent=0 // pred_fallthru
    _
  // Predicated region
  $region22: #{tpu_custom_call.1} parent=0 // pred_check
    _
  $region23: #{tpu_custom_call.1} parent=0 // pred_check_branch
    %28 = sbr.rel (0) target = $region25
  $region24: #{tpu_custom_call.1} parent=0 // pred_region
    _
  $region25: #{tpu_custom_call.1} parent=0 // pred_fallthru
    _
  // Predicated region
  $region26: #{tpu_custom_call.1} parent=0 // pred_check
    _
  $region27: #{tpu_custom_call.1} parent=0 // pred_check_branch
    %30 = sbr.rel (0) target = $region29
  $region28: #{tpu_custom_call.1} parent=0 // pred_region
    _
  $region29: #{tpu_custom_call.1} parent=0 // pred_fallthru
    _
  // Predicated region
  $region30: #{tpu_custom_call.1} parent=0 // pred_check
    _
  $region31: #{tpu_custom_call.1} parent=0 // pred_check_branch
    %32 = sbr.rel (0) target = $region33
  $region32: #{tpu_custom_call.1} parent=0 // pred_region
    _
  $region33: #{tpu_custom_call.1} parent=0 // pred_fallthru
    _
  // Predicated region
  $region34: #{tpu_custom_call.1} parent=0 // pred_check
    _
  $region35: #{tpu_custom_call.1} parent=0 // pred_check_branch
    %34 = sbr.rel (0) target = $region37
  $region36: #{tpu_custom_call.1} parent=0 // pred_region
    _
  $region37: #{tpu_custom_call.1} parent=0 // pred_fallthru
    _
  // Predicated region
  $region38: #{tpu_custom_call.1} parent=0 // pred_check
    _
  $region39: #{tpu_custom_call.1} parent=0 // pred_check_branch
    %36 = sbr.rel (0) target = $region41
  $region40: #{tpu_custom_call.1} parent=0 // pred_region
    _
  $region41: #{tpu_custom_call.1} parent=0 // pred_fallthru
    _
  // Predicated region
  $region42: #{tpu_custom_call.1} parent=0 // pred_check
    _
  $region43: #{tpu_custom_call.1} parent=0 // pred_check_branch
    %38 = sbr.rel (0) target = $region45
  $region44: #{tpu_custom_call.1} parent=0 // pred_region
    _
  $region45: #{tpu_custom_call.1} parent=0 // pred_fallthru
    _
  // Predicated region
  $region46: #{tpu_custom_call.1} parent=0 // pred_check
    _
  $region47: #{tpu_custom_call.1} parent=0 // pred_check_branch
    %40 = sbr.rel (0) target = $region49
  $region48: #{tpu_custom_call.1} parent=0 // pred_region
    _
  $region49: #{tpu_custom_call.1} parent=0 // pred_fallthru
    _
  %v41 = vld [vmem:[%s0] sm:$0xff]
  %v42 = vld [vmem:[%s0 + $0x8] sm:$0xff]
  %v43 = vld [vmem:[%s0 + $0x10] sm:$0xff]
  %v44 = vld [vmem:[%s0 + $0x18] sm:$0xff]
  %v45 = vld [vmem:[%s0 + $0x20] sm:$0xff]
  %v46 = vld [vmem:[%s0 + $0x28] sm:$0xff]
  %v47 = vld [vmem:[%s0 + $0x30] sm:$0xff]
  %v48 = vld [vmem:[%s0 + $0x38] sm:$0xff]
  %v49 = vlaneseq
  %v50 = vand.u32 %v49, 127
  %51 = vset.pattern.permute.xlu0 0
  %52 = vperm.xlu0 %51, %v41
  %v53 = vpop.permute.xlu0 %52
  %54 = vset.pattern.permute.xlu0 0
  %55 = vperm.xlu0 %54, %v42
  %v56 = vpop.permute.xlu0 %55
  %57 = vset.pattern.permute.xlu0 0
  %58 = vperm.xlu0 %57, %v43
  %v59 = vpop.permute.xlu0 %58
  %60 = vset.pattern.permute.xlu0 0
  %61 = vperm.xlu0 %60, %v44
  %v62 = vpop.permute.xlu0 %61
  %63 = vset.pattern.permute.xlu0 0
  %64 = vperm.xlu0 %63, %v45
  %v65 = vpop.permute.xlu0 %64
  %66 = vset.pattern.permute.xlu0 0
  %67 = vperm.xlu0 %66, %v46
  %v68 = vpop.permute.xlu0 %67
  %69 = vset.pattern.permute.xlu0 0
  %70 = vperm.xlu0 %69, %v47
  %v71 = vpop.permute.xlu0 %70
  %72 = vset.pattern.permute.xlu0 0
  %73 = vperm.xlu0 %72, %v48
  %v74 = vpop.permute.xlu0 %73
  %vm75 = vcmp.eq.s32.totalorder %v50, %v53
  %vm76 = vcmp.eq.s32.totalorder %v50, %v56
  %vm77 = vcmp.eq.s32.totalorder %v50, %v59
  %vm78 = vcmp.eq.s32.totalorder %v50, %v62
  %vm79 = vcmp.eq.s32.totalorder %v50, %v65
  %vm80 = vcmp.eq.s32.totalorder %v50, %v68
  %vm81 = vcmp.eq.s32.totalorder %v50, %v71
  %vm82 = vcmp.eq.s32.totalorder %v50, %v74
  %v83 = vsel %vm75, 1, 0
  %v84 = vsel %vm76, 1, 0
  %v85 = vsel %vm77, 1, 0
  %v86 = vsel %vm78, 1, 0
  %v87 = vsel %vm79, 1, 0
  %v88 = vsel %vm80, 1, 0
  %v89 = vsel %vm81, 1, 0
  %v90 = vsel %vm82, 1, 0
  %v91 = vcvt.s32.f32 %v83
  %v92 = vcvt.s32.f32 %v84
  %v93 = vcvt.s32.f32 %v85
  %v94 = vcvt.s32.f32 %v86
  %v95 = vcvt.s32.f32 %v87
  %v96 = vcvt.s32.f32 %v88
  %v97 = vcvt.s32.f32 %v89
  %v98 = vcvt.s32.f32 %v90
  %v99 = vld [vmem:[%s2] sm:$0xff]
  %v100 = vld [vmem:[%s2 + $0x8] sm:$0xff]
  %vm101 = vcmask 130048
  %v103 = vsel %vm101, %v91, 0
  %v106 = vsel %vm101, %v92, 0
  %v109 = vsel %vm101, %v93, 0
  %v112 = vsel %vm101, %v94, 0
  %v115 = vsel %vm101, %v95, 0
  %v118 = vsel %vm101, %v96, 0
  %v121 = vsel %vm101, %v97, 0
  %v124 = vsel %vm101, %v98, 0
  %126 = vmatprep.subr.mxu0 0.0
  %127 = vmatpush1.msra.mxu0 %v99
  %128 = vmatprep.subr.mxu0 0.0
  %129 = vmatpush1.msra.mxu0 %v100
  %130 = vmatprep.subr.mxu0 0.0
  %131 = vmatpush1.msra.mxu0 0.0
  %132 = vmatprep.subr.mxu0 0.0
  %133 = vmatpush1.msra.mxu0 0.0
  %134 = vmatprep.subr.mxu0 0.0
  %135 = vmatpush1.msra.mxu0 0.0
  %136 = vmatprep.subr.mxu0 0.0
  %137 = vmatpush1.msra.mxu0 0.0
  %138 = vmatprep.subr.mxu0 0.0
  %139 = vmatpush1.msra.mxu0 0.0
  %140 = vmatprep.subr.mxu0 0.0
  %141 = vmatpush1.msra.mxu0 0.0
  %142 = vmatprep.subr.mxu0 0.0
  %143 = vmatpush1.msra.mxu0 0.0
  %144 = vmatprep.subr.mxu0 0.0
  %145 = vmatpush1.msra.mxu0 0.0
  %146 = vmatprep.subr.mxu0 0.0
  %147 = vmatpush1.msra.mxu0 0.0
  %148 = vmatprep.subr.mxu0 0.0
  %149 = vmatpush1.msra.mxu0 0.0
  %150 = vmatprep.subr.mxu0 0.0
  %151 = vmatpush1.msra.mxu0 0.0
  %152 = vmatprep.subr.mxu0 0.0
  %153 = vmatpush1.msra.mxu0 0.0
  %154 = vmatprep.subr.mxu0 0.0
  %155 = vmatpush1.msra.mxu0 0.0
  %156 = vmatprep.subr.mxu0 0.0
  %157 = vmatpush1.msra.mxu0 0.0
  %158 = vmatprep.subr.mxu0 0.0
  %159 = vmatpush1.msra.mxu0 0.0
  %160 = vmatprep.subr.mxu0 0.0
  %161 = vmatpush1.msra.mxu0 0.0
  %162 = vmatprep.subr.mxu0 0.0
  %163 = vmatpush1.msra.mxu0 0.0
  %164 = vmatprep.subr.mxu0 0.0
  %165 = vmatpush1.msra.mxu0 0.0
  %166 = vmatprep.subr.mxu0 0.0
  %167 = vmatpush1.msra.mxu0 0.0
  %168 = vmatprep.subr.mxu0 0.0
  %169 = vmatpush1.msra.mxu0 0.0
  %170 = vmatprep.subr.mxu0 0.0
  %171 = vmatpush1.msra.mxu0 0.0
  %172 = vmatprep.subr.mxu0 0.0
  %173 = vmatpush1.msra.mxu0 0.0
  %174 = vmatprep.subr.mxu0 0.0
  %175 = vmatpush1.msra.mxu0 0.0
  %176 = vmatprep.subr.mxu0 0.0
  %177 = vmatpush1.msra.mxu0 0.0
  %178 = vmatprep.subr.mxu0 0.0
  %179 = vmatpush1.msra.mxu0 0.0
  %180 = vmatprep.subr.mxu0 0.0
  %181 = vmatpush1.msra.mxu0 0.0
  %182 = vmatprep.subr.mxu0 0.0
  %183 = vmatpush1.msra.mxu0 0.0
  %184 = vmatprep.subr.mxu0 0.0
  %185 = vmatpush1.msra.mxu0 0.0
  %186 = vmatprep.subr.mxu0 0.0
  %187 = vmatpush1.msra.mxu0 0.0
  %188 = vmatprep.subr.mxu0 0.0
  %189 = vmatpush1.msra.mxu0 0.0
  %190 = vmatprep.mubr.f32.mxu0 0.0
  %191 = vmatmul.mubr.f32.gmra.mrb[0].mxu0 %v103
  %v192 = vpop.f32.mrb[0].mxu0
  %v193 = vadd.f32 0.0, %v192
  %v194 = vpop.f32.mrb[0].mxu0
  %195 = vmatprep.mubr.f32.mxu0 0.0
  %196 = vmatmul.mubr.f32.gmra.mrb[0].mxu0 %v106
  %v197 = vpop.f32.mrb[0].mxu0
  %v198 = vadd.f32 0.0, %v197
  %v199 = vpop.f32.mrb[0].mxu0
  %200 = vmatprep.mubr.f32.mxu0 0.0
  %201 = vmatmul.mubr.f32.gmra.mrb[0].mxu0 %v109
  %v202 = vpop.f32.mrb[0].mxu0
  %v203 = vadd.f32 0.0, %v202
  %v204 = vpop.f32.mrb[0].mxu0
  %205 = vmatprep.mubr.f32.mxu0 0.0
  %206 = vmatmul.mubr.f32.gmra.mrb[0].mxu0 %v112
  %v207 = vpop.f32.mrb[0].mxu0
  %v208 = vadd.f32 0.0, %v207
  %v209 = vpop.f32.mrb[0].mxu0
  %210 = vmatprep.mubr.f32.mxu0 0.0
  %211 = vmatmul.mubr.f32.gmra.mrb[0].mxu0 %v115
  %v212 = vpop.f32.mrb[0].mxu0
  %v213 = vadd.f32 0.0, %v212
  %v214 = vpop.f32.mrb[0].mxu0
  %215 = vmatprep.mubr.f32.mxu0 0.0
  %216 = vmatmul.mubr.f32.gmra.mrb[0].mxu0 %v118
  %v217 = vpop.f32.mrb[0].mxu0
  %v218 = vadd.f32 0.0, %v217
  %v219 = vpop.f32.mrb[0].mxu0
  %220 = vmatprep.mubr.f32.mxu0 0.0
  %221 = vmatmul.mubr.f32.gmra.mrb[0].mxu0 %v121
  %v222 = vpop.f32.mrb[0].mxu0
  %v223 = vadd.f32 0.0, %v222
  %v224 = vpop.f32.mrb[0].mxu0
  %225 = vmatprep.mubr.f32.mxu0 0.0
  %226 = vmatmul.mubr.f32.gmra.mrb[0].mxu0 %v124
  %v227 = vpop.f32.mrb[0].mxu0
  %v228 = vadd.f32 0.0, %v227
  %v229 = vpop.f32.mrb[0].mxu0
  %230 = vdwg.mxu0
  %v231 = vld [vmem:[%s1] sm:$0xff]
  %v232 = vld [vmem:[%s1 + $0x8] sm:$0xff]
  %v233 = vld [vmem:[%s1 + $0x10] sm:$0xff]
  %v234 = vld [vmem:[%s1 + $0x18] sm:$0xff]
  %v235 = vld [vmem:[%s1 + $0x20] sm:$0xff]
  %v236 = vld [vmem:[%s1 + $0x28] sm:$0xff]
  %v237 = vld [vmem:[%s1 + $0x30] sm:$0xff]
  %v238 = vld [vmem:[%s1 + $0x38] sm:$0xff]
  %v239 = vld [vmem:[%s3] sm:$0xff]
  %v240 = vld [vmem:[%s3 + $0x8] sm:$0xff]
  %v241 = vld [vmem:[%s3 + $0x10] sm:$0xff]
  %v242 = vld [vmem:[%s3 + $0x18] sm:$0xff]
  %v243 = vld [vmem:[%s3 + $0x20] sm:$0xff]
  %v244 = vld [vmem:[%s3 + $0x28] sm:$0xff]
  %v245 = vld [vmem:[%s3 + $0x30] sm:$0xff]
  %v246 = vld [vmem:[%s3 + $0x38] sm:$0xff]
  %v247 = vld [vmem:[%s4] sm:$0x3]
  %v248 = vld [vmem:[%s5] sm:$0xff]
  %v249 = vld [vmem:[%s5 + $0x8] sm:$0xff]
  %v251 = vsel %vm101, %v193, 0
  %v254 = vsel %vm101, %v198, 0
  %v257 = vsel %vm101, %v203, 0
  %v260 = vsel %vm101, %v208, 0
  %v263 = vsel %vm101, %v213, 0
  %v266 = vsel %vm101, %v218, 0
  %v269 = vsel %vm101, %v223, 0
  %v272 = vsel %vm101, %v228, 0
  %274 = vmatprep.subr.mxu0 0.0
  %275 = vmatpush1.msra.mxu0 %v248
  %276 = vmatprep.subr.mxu0 0.0
  %277 = vmatpush1.msra.mxu0 %v249
  %278 = vmatprep.subr.mxu0 0.0
  %279 = vmatpush1.msra.mxu0 0.0
  %280 = vmatprep.subr.mxu0 0.0
  %281 = vmatpush1.msra.mxu0 0.0
  %282 = vmatprep.subr.mxu0 0.0
  %283 = vmatpush1.msra.mxu0 0.0
  %284 = vmatprep.subr.mxu0 0.0
  %285 = vmatpush1.msra.mxu0 0.0
  %286 = vmatprep.subr.mxu0 0.0
  %287 = vmatpush1.msra.mxu0 0.0
  %288 = vmatprep.subr.mxu0 0.0
  %289 = vmatpush1.msra.mxu0 0.0
  %290 = vmatprep.subr.mxu0 0.0
  %291 = vmatpush1.msra.mxu0 0.0
  %292 = vmatprep.subr.mxu0 0.0
  %293 = vmatpush1.msra.mxu0 0.0
  %294 = vmatprep.subr.mxu0 0.0
  %295 = vmatpush1.msra.mxu0 0.0
  %296 = vmatprep.subr.mxu0 0.0
  %297 = vmatpush1.msra.mxu0 0.0
  %298 = vmatprep.subr.mxu0 0.0
  %299 = vmatpush1.msra.mxu0 0.0
  %300 = vmatprep.subr.mxu0 0.0
  %301 = vmatpush1.msra.mxu0 0.0
  %302 = vmatprep.subr.mxu0 0.0
  %303 = vmatpush1.msra.mxu0 0.0
  %304 = vmatprep.subr.mxu0 0.0
  %305 = vmatpush1.msra.mxu0 0.0
  %306 = vmatprep.subr.mxu0 0.0
  %307 = vmatpush1.msra.mxu0 0.0
  %308 = vmatprep.subr.mxu0 0.0
  %309 = vmatpush1.msra.mxu0 0.0
  %310 = vmatprep.subr.mxu0 0.0
  %311 = vmatpush1.msra.mxu0 0.0
  %312 = vmatprep.subr.mxu0 0.0
  %313 = vmatpush1.msra.mxu0 0.0
  %314 = vmatprep.subr.mxu0 0.0
  %315 = vmatpush1.msra.mxu0 0.0
  %316 = vmatprep.subr.mxu0 0.0
  %317 = vmatpush1.msra.mxu0 0.0
  %318 = vmatprep.subr.mxu0 0.0
  %319 = vmatpush1.msra.mxu0 0.0
  %320 = vmatprep.subr.mxu0 0.0
  %321 = vmatpush1.msra.mxu0 0.0
  %322 = vmatprep.subr.mxu0 0.0
  %323 = vmatpush1.msra.mxu0 0.0
  %324 = vmatprep.subr.mxu0 0.0
  %325 = vmatpush1.msra.mxu0 0.0
  %326 = vmatprep.subr.mxu0 0.0
  %327 = vmatpush1.msra.mxu0 0.0
  %328 = vmatprep.subr.mxu0 0.0
  %329 = vmatpush1.msra.mxu0 0.0
  %330 = vmatprep.subr.mxu0 0.0
  %331 = vmatpush1.msra.mxu0 0.0
  %332 = vmatprep.subr.mxu0 0.0
  %333 = vmatpush1.msra.mxu0 0.0
  %334 = vmatprep.subr.mxu0 0.0
  %335 = vmatpush1.msra.mxu0 0.0
  %336 = vmatprep.subr.mxu0 0.0
  %337 = vmatpush1.msra.mxu0 0.0
  %338 = vmatprep.mubr.f32.mxu0 0.0
  %339 = vmatmul.mubr.f32.gmra.mrb[0].mxu0 %v251
  %v340 = vpop.f32.mrb[0].mxu0
  %v341 = vadd.f32 0.0, %v340
  %v342 = vpop.f32.mrb[0].mxu0
  %343 = vmatprep.mubr.f32.mxu0 0.0
  %344 = vmatmul.mubr.f32.gmra.mrb[0].mxu0 %v254
  %v345 = vpop.f32.mrb[0].mxu0
  %v346 = vadd.f32 0.0, %v345
  %v347 = vpop.f32.mrb[0].mxu0
  %348 = vmatprep.mubr.f32.mxu0 0.0
  %349 = vmatmul.mubr.f32.gmra.mrb[0].mxu0 %v257
  %v350 = vpop.f32.mrb[0].mxu0
  %v351 = vadd.f32 0.0, %v350
  %v352 = vpop.f32.mrb[0].mxu0
  %353 = vmatprep.mubr.f32.mxu0 0.0
  %354 = vmatmul.mubr.f32.gmra.mrb[0].mxu0 %v260
  %v355 = vpop.f32.mrb[0].mxu0
  %v356 = vadd.f32 0.0, %v355
  %v357 = vpop.f32.mrb[0].mxu0
  %358 = vmatprep.mubr.f32.mxu0 0.0
  %359 = vmatmul.mubr.f32.gmra.mrb[0].mxu0 %v263
  %v360 = vpop.f32.mrb[0].mxu0
  %v361 = vadd.f32 0.0, %v360
  %v362 = vpop.f32.mrb[0].mxu0
  %363 = vmatprep.mubr.f32.mxu0 0.0
  %364 = vmatmul.mubr.f32.gmra.mrb[0].mxu0 %v266
  %v365 = vpop.f32.mrb[0].mxu0
  %v366 = vadd.f32 0.0, %v365
  %v367 = vpop.f32.mrb[0].mxu0
  %368 = vmatprep.mubr.f32.mxu0 0.0
  %369 = vmatmul.mubr.f32.gmra.mrb[0].mxu0 %v269
  %v370 = vpop.f32.mrb[0].mxu0
  %v371 = vadd.f32 0.0, %v370
  %v372 = vpop.f32.mrb[0].mxu0
  %373 = vmatprep.mubr.f32.mxu0 0.0
  %374 = vmatmul.mubr.f32.gmra.mrb[0].mxu0 %v272
  %v375 = vpop.f32.mrb[0].mxu0
  %v376 = vadd.f32 0.0, %v375
  %v377 = vpop.f32.mrb[0].mxu0
  %378 = vdwg.mxu0
  %vm379 = vcmask 15360
  %v381 = vsel %vm379, %v231, 0
  %v384 = vsel %vm379, %v232, 0
  %v387 = vsel %vm379, %v233, 0
  %v390 = vsel %vm379, %v234, 0
  %v393 = vsel %vm379, %v235, 0
  %v396 = vsel %vm379, %v236, 0
  %v399 = vsel %vm379, %v237, 0
  %v402 = vsel %vm379, %v238, 0
  %vm404 = vcmask 1041408
  %v406 = vsel %vm404, %v247, 0
  %408 = vmatprep.subr.mxu0 0.0
  %409 = vmatpush1.msra.mxu0 %v406
  %410 = vmatprep.subr.mxu0 0.0
  %411 = vmatpush1.msra.mxu0 0.0
  %412 = vmatprep.subr.mxu0 0.0
  %413 = vmatpush1.msra.mxu0 0.0
  %414 = vmatprep.subr.mxu0 0.0
  %415 = vmatpush1.msra.mxu0 0.0
  %416 = vmatprep.subr.mxu0 0.0
  %417 = vmatpush1.msra.mxu0 0.0
  %418 = vmatprep.subr.mxu0 0.0
  %419 = vmatpush1.msra.mxu0 0.0
  %420 = vmatprep.subr.mxu0 0.0
  %421 = vmatpush1.msra.mxu0 0.0
  %422 = vmatprep.subr.mxu0 0.0
  %423 = vmatpush1.msra.mxu0 0.0
  %424 = vmatprep.subr.mxu0 0.0
  %425 = vmatpush1.msra.mxu0 0.0
  %426 = vmatprep.subr.mxu0 0.0
  %427 = vmatpush1.msra.mxu0 0.0
  %428 = vmatprep.subr.mxu0 0.0
  %429 = vmatpush1.msra.mxu0 0.0
  %430 = vmatprep.subr.mxu0 0.0
  %431 = vmatpush1.msra.mxu0 0.0
  %432 = vmatprep.subr.mxu0 0.0
  %433 = vmatpush1.msra.mxu0 0.0
  %434 = vmatprep.subr.mxu0 0.0
  %435 = vmatpush1.msra.mxu0 0.0
  %436 = vmatprep.subr.mxu0 0.0
  %437 = vmatpush1.msra.mxu0 0.0
  %438 = vmatprep.subr.mxu0 0.0
  %439 = vmatpush1.msra.mxu0 0.0
  %440 = vmatprep.subr.mxu0 0.0
  %441 = vmatpush1.msra.mxu0 0.0
  %442 = vmatprep.subr.mxu0 0.0
  %443 = vmatpush1.msra.mxu0 0.0
  %444 = vmatprep.subr.mxu0 0.0
  %445 = vmatpush1.msra.mxu0 0.0
  %446 = vmatprep.subr.mxu0 0.0
  %447 = vmatpush1.msra.mxu0 0.0
  %448 = vmatprep.subr.mxu0 0.0
  %449 = vmatpush1.msra.mxu0 0.0
  %450 = vmatprep.subr.mxu0 0.0
  %451 = vmatpush1.msra.mxu0 0.0
  %452 = vmatprep.subr.mxu0 0.0
  %453 = vmatpush1.msra.mxu0 0.0
  %454 = vmatprep.subr.mxu0 0.0
  %455 = vmatpush1.msra.mxu0 0.0
  %456 = vmatprep.subr.mxu0 0.0
  %457 = vmatpush1.msra.mxu0 0.0
  %458 = vmatprep.subr.mxu0 0.0
  %459 = vmatpush1.msra.mxu0 0.0
  %460 = vmatprep.subr.mxu0 0.0
  %461 = vmatpush1.msra.mxu0 0.0
  %462 = vmatprep.subr.mxu0 0.0
  %463 = vmatpush1.msra.mxu0 0.0
  %464 = vmatprep.subr.mxu0 0.0
  %465 = vmatpush1.msra.mxu0 0.0
  %466 = vmatprep.subr.mxu0 0.0
  %467 = vmatpush1.msra.mxu0 0.0
  %468 = vmatprep.subr.mxu0 0.0
  %469 = vmatpush1.msra.mxu0 0.0
  %470 = vmatprep.subr.mxu0 0.0
  %471 = vmatpush1.msra.mxu0 0.0
  %472 = vmatprep.mubr.f32.mxu0 0.0
  %473 = vmatmul.mubr.f32.gmra.mrb[0].mxu0 %v381
  %v474 = vpop.f32.mrb[0].mxu0
  %v475 = vadd.f32 %v341, %v474
  %v476 = vpop.f32.mrb[0].mxu0
  %477 = vmatprep.mubr.f32.mxu0 0.0
  %478 = vmatmul.mubr.f32.gmra.mrb[0].mxu0 %v384
  %v479 = vpop.f32.mrb[0].mxu0
  %v480 = vadd.f32 %v346, %v479
  %v481 = vpop.f32.mrb[0].mxu0
  %482 = vmatprep.mubr.f32.mxu0 0.0
  %483 = vmatmul.mubr.f32.gmra.mrb[0].mxu0 %v387
  %v484 = vpop.f32.mrb[0].mxu0
  %v485 = vadd.f32 %v351, %v484
  %v486 = vpop.f32.mrb[0].mxu0
  %487 = vmatprep.mubr.f32.mxu0 0.0
  %488 = vmatmul.mubr.f32.gmra.mrb[0].mxu0 %v390
  %v489 = vpop.f32.mrb[0].mxu0
  %v490 = vadd.f32 %v356, %v489
  %v491 = vpop.f32.mrb[0].mxu0
  %492 = vmatprep.mubr.f32.mxu0 0.0
  %493 = vmatmul.mubr.f32.gmra.mrb[0].mxu0 %v393
  %v494 = vpop.f32.mrb[0].mxu0
  %v495 = vadd.f32 %v361, %v494
  %v496 = vpop.f32.mrb[0].mxu0
  %497 = vmatprep.mubr.f32.mxu0 0.0
  %498 = vmatmul.mubr.f32.gmra.mrb[0].mxu0 %v396
  %v499 = vpop.f32.mrb[0].mxu0
  %v500 = vadd.f32 %v366, %v499
  %v501 = vpop.f32.mrb[0].mxu0
  %502 = vmatprep.mubr.f32.mxu0 0.0
  %503 = vmatmul.mubr.f32.gmra.mrb[0].mxu0 %v399
  %v504 = vpop.f32.mrb[0].mxu0
  %v505 = vadd.f32 %v371, %v504
  %v506 = vpop.f32.mrb[0].mxu0
  %507 = vmatprep.mubr.f32.mxu0 0.0
  %508 = vmatmul.mubr.f32.gmra.mrb[0].mxu0 %v402
  %v509 = vpop.f32.mrb[0].mxu0
  %v510 = vadd.f32 %v376, %v509
  %v511 = vpop.f32.mrb[0].mxu0
  %512 = vdwg.mxu0
  %v513 = vld [vmem:[%s6] sm:$0xff]
  %v514 = vld [vmem:[%s6 + $0x8] sm:$0xff]
  %v516 = vsel %vm101, %v239, 0
  %v519 = vsel %vm101, %v240, 0
  %v522 = vsel %vm101, %v241, 0
  %v525 = vsel %vm101, %v242, 0
  %v528 = vsel %vm101, %v243, 0
  %v531 = vsel %vm101, %v244, 0
  %v534 = vsel %vm101, %v245, 0
  %v537 = vsel %vm101, %v246, 0
  %539 = vmatprep.subr.mxu0 0.0
  %540 = vmatpush1.msra.mxu0 %v513
  %541 = vmatprep.subr.mxu0 0.0
  %542 = vmatpush1.msra.mxu0 %v514
  %543 = vmatprep.subr.mxu0 0.0
  %544 = vmatpush1.msra.mxu0 0.0
  %545 = vmatprep.subr.mxu0 0.0
  %546 = vmatpush1.msra.mxu0 0.0
  %547 = vmatprep.subr.mxu0 0.0
  %548 = vmatpush1.msra.mxu0 0.0
  %549 = vmatprep.subr.mxu0 0.0
  %550 = vmatpush1.msra.mxu0 0.0
  %551 = vmatprep.subr.mxu0 0.0
  %552 = vmatpush1.msra.mxu0 0.0
  %553 = vmatprep.subr.mxu0 0.0
  %554 = vmatpush1.msra.mxu0 0.0
  %555 = vmatprep.subr.mxu0 0.0
  %556 = vmatpush1.msra.mxu0 0.0
  %557 = vmatprep.subr.mxu0 0.0
  %558 = vmatpush1.msra.mxu0 0.0
  %559 = vmatprep.subr.mxu0 0.0
  %560 = vmatpush1.msra.mxu0 0.0
  %561 = vmatprep.subr.mxu0 0.0
  %562 = vmatpush1.msra.mxu0 0.0
  %563 = vmatprep.subr.mxu0 0.0
  %564 = vmatpush1.msra.mxu0 0.0
  %565 = vmatprep.subr.mxu0 0.0
  %566 = vmatpush1.msra.mxu0 0.0
  %567 = vmatprep.subr.mxu0 0.0
  %568 = vmatpush1.msra.mxu0 0.0
  %569 = vmatprep.subr.mxu0 0.0
  %570 = vmatpush1.msra.mxu0 0.0
  %571 = vmatprep.subr.mxu0 0.0
  %572 = vmatpush1.msra.mxu0 0.0
  %573 = vmatprep.subr.mxu0 0.0
  %574 = vmatpush1.msra.mxu0 0.0
  %575 = vmatprep.subr.mxu0 0.0
  %576 = vmatpush1.msra.mxu0 0.0
  %577 = vmatprep.subr.mxu0 0.0
  %578 = vmatpush1.msra.mxu0 0.0
  %579 = vmatprep.subr.mxu0 0.0
  %580 = vmatpush1.msra.mxu0 0.0
  %581 = vmatprep.subr.mxu0 0.0
  %582 = vmatpush1.msra.mxu0 0.0
  %583 = vmatprep.subr.mxu0 0.0
  %584 = vmatpush1.msra.mxu0 0.0
  %585 = vmatprep.subr.mxu0 0.0
  %586 = vmatpush1.msra.mxu0 0.0
  %587 = vmatprep.subr.mxu0 0.0
  %588 = vmatpush1.msra.mxu0 0.0
  %589 = vmatprep.subr.mxu0 0.0
  %590 = vmatpush1.msra.mxu0 0.0
  %591 = vmatprep.subr.mxu0 0.0
  %592 = vmatpush1.msra.mxu0 0.0
  %593 = vmatprep.subr.mxu0 0.0
  %594 = vmatpush1.msra.mxu0 0.0
  %595 = vmatprep.subr.mxu0 0.0
  %596 = vmatpush1.msra.mxu0 0.0
  %597 = vmatprep.subr.mxu0 0.0
  %598 = vmatpush1.msra.mxu0 0.0
  %599 = vmatprep.subr.mxu0 0.0
  %600 = vmatpush1.msra.mxu0 0.0
  %601 = vmatprep.subr.mxu0 0.0
  %602 = vmatpush1.msra.mxu0 0.0
  %603 = vmatprep.mubr.f32.mxu0 0.0
  %604 = vmatmul.mubr.f32.gmra.mrb[0].mxu0 %v516
  %v605 = vpop.f32.mrb[0].mxu0
  %v606 = vadd.f32 0.0, %v605
  %v607 = vpop.f32.mrb[0].mxu0
  %608 = vmatprep.mubr.f32.mxu0 0.0
  %609 = vmatmul.mubr.f32.gmra.mrb[0].mxu0 %v519
  %v610 = vpop.f32.mrb[0].mxu0
  %v611 = vadd.f32 0.0, %v610
  %v612 = vpop.f32.mrb[0].mxu0
  %613 = vmatprep.mubr.f32.mxu0 0.0
  %614 = vmatmul.mubr.f32.gmra.mrb[0].mxu0 %v522
  %v615 = vpop.f32.mrb[0].mxu0
  %v616 = vadd.f32 0.0, %v615
  %v617 = vpop.f32.mrb[0].mxu0
  %618 = vmatprep.mubr.f32.mxu0 0.0
  %619 = vmatmul.mubr.f32.gmra.mrb[0].mxu0 %v525
  %v620 = vpop.f32.mrb[0].mxu0
  %v621 = vadd.f32 0.0, %v620
  %v622 = vpop.f32.mrb[0].mxu0
  %623 = vmatprep.mubr.f32.mxu0 0.0
  %624 = vmatmul.mubr.f32.gmra.mrb[0].mxu0 %v528
  %v625 = vpop.f32.mrb[0].mxu0
  %v626 = vadd.f32 0.0, %v625
  %v627 = vpop.f32.mrb[0].mxu0
  %628 = vmatprep.mubr.f32.mxu0 0.0
  %629 = vmatmul.mubr.f32.gmra.mrb[0].mxu0 %v531
  %v630 = vpop.f32.mrb[0].mxu0
  %v631 = vadd.f32 0.0, %v630
  %v632 = vpop.f32.mrb[0].mxu0
  %633 = vmatprep.mubr.f32.mxu0 0.0
  %634 = vmatmul.mubr.f32.gmra.mrb[0].mxu0 %v534
  %v635 = vpop.f32.mrb[0].mxu0
  %v636 = vadd.f32 0.0, %v635
  %v637 = vpop.f32.mrb[0].mxu0
  %638 = vmatprep.mubr.f32.mxu0 0.0
  %639 = vmatmul.mubr.f32.gmra.mrb[0].mxu0 %v537
  %v640 = vpop.f32.mrb[0].mxu0
  %v641 = vadd.f32 0.0, %v640
  %v642 = vpop.f32.mrb[0].mxu0
  %643 = vdwg.mxu0
  %v644 = vadd.f32 %v475, %v606
  %v645 = vadd.f32 %v480, %v611
  %v646 = vadd.f32 %v485, %v616
  %v647 = vadd.f32 %v490, %v621
  %v648 = vadd.f32 %v495, %v626
  %v649 = vadd.f32 %v500, %v631
  %v650 = vadd.f32 %v505, %v636
  %v651 = vadd.f32 %v510, %v641
  %v652 = vld [vmem:[%s7] sm:$0x1]
  %v654 = vlaneseq
  %v655 = vshrl.u32 %v654, 7
  %v656 = vsub.s32 0, %v655
  %v657 = vrot.slane %v652, %v656
  %v659 = vadd.f32 %v644, %v657
  %v660 = vadd.f32 %v645, %v657
  %v661 = vadd.f32 %v646, %v657
  %v662 = vadd.f32 %v647, %v657
  %v663 = vadd.f32 %v648, %v657
  %v664 = vadd.f32 %v649, %v657
  %v665 = vadd.f32 %v650, %v657
  %v666 = vadd.f32 %v651, %v657
  %vm667 = vcmp.gt.f32.partialorder %v659, 0.0
  %vm668 = vcmp.gt.f32.partialorder %v660, 0.0
  %vm669 = vcmp.gt.f32.partialorder %v661, 0.0
  %vm670 = vcmp.gt.f32.partialorder %v662, 0.0
  %vm671 = vcmp.gt.f32.partialorder %v663, 0.0
  %vm672 = vcmp.gt.f32.partialorder %v664, 0.0
  %vm673 = vcmp.gt.f32.partialorder %v665, 0.0
  %vm674 = vcmp.gt.f32.partialorder %v666, 0.0
  %v675 = vmin.f32 %v659, 0.0
  %v676 = vmin.f32 %v660, 0.0
  %v677 = vmin.f32 %v661, 0.0
  %v678 = vmin.f32 %v662, 0.0
  %v679 = vmin.f32 %v663, 0.0
  %v680 = vmin.f32 %v664, 0.0
  %v681 = vmin.f32 %v665, 0.0
  %v682 = vmin.f32 %v666, 0.0
  %v683 = vmul.f32 %v675, 1.442695
  %v684 = vpow.pop %v683
  %v685 = vmul.f32 %v676, 1.442695
  %v686 = vpow.pop %v685
  %v687 = vmul.f32 %v677, 1.442695
  %v688 = vpow.pop %v687
  %v689 = vmul.f32 %v678, 1.442695
  %v690 = vpow.pop %v689
  %v691 = vmul.f32 %v679, 1.442695
  %v692 = vpow.pop %v691
  %v693 = vmul.f32 %v680, 1.442695
  %v694 = vpow.pop %v693
  %v695 = vmul.f32 %v681, 1.442695
  %v696 = vpow.pop %v695
  %v697 = vmul.f32 %v682, 1.442695
  %v698 = vpow.pop %v697
  %v699 = vsub.f32 %v684, 1.0
  %v700 = vsub.f32 %v686, 1.0
  %v701 = vsub.f32 %v688, 1.0
  %v702 = vsub.f32 %v690, 1.0
  %v703 = vsub.f32 %v692, 1.0
  %v704 = vsub.f32 %v694, 1.0
  %v705 = vsub.f32 %v696, 1.0
  %v706 = vsub.f32 %v698, 1.0
  %v707 = vmul.f32 %v699, 1.6732632
  %v708 = vmul.f32 %v700, 1.6732632
  %v709 = vmul.f32 %v701, 1.6732632
  %v710 = vmul.f32 %v702, 1.6732632
  %v711 = vmul.f32 %v703, 1.6732632
  %v712 = vmul.f32 %v704, 1.6732632
  %v713 = vmul.f32 %v705, 1.6732632
  %v714 = vmul.f32 %v706, 1.6732632
  %v715 = vsel %vm667, %v659, %v707
  %v716 = vsel %vm668, %v660, %v708
  %v717 = vsel %vm669, %v661, %v709
  %v718 = vsel %vm670, %v662, %v710
  %v719 = vsel %vm671, %v663, %v711
  %v720 = vsel %vm672, %v664, %v712
  %v721 = vsel %vm673, %v665, %v713
  %v722 = vsel %vm674, %v666, %v714
  %v723 = vmul.f32 %v715, 1.050701
  %v724 = vmul.f32 %v716, 1.050701
  %v725 = vmul.f32 %v717, 1.050701
  %v726 = vmul.f32 %v718, 1.050701
  %v727 = vmul.f32 %v719, 1.050701
  %v728 = vmul.f32 %v720, 1.050701
  %v729 = vmul.f32 %v721, 1.050701
  %v730 = vmul.f32 %v722, 1.050701
  %v731 = vld [vmem:[%s8] sm:$0xff]
  %v732 = vld [vmem:[%s8 + $0x8] sm:$0xff]
  %v733 = vld [vmem:[%s8 + $0x10] sm:$0xff]
  %v734 = vld [vmem:[%s8 + $0x18] sm:$0xff]
  %v735 = vld [vmem:[%s9] sm:$0x1]
  %v737 = vlaneseq
  %v738 = vshrl.u32 %v737, 7
  %v739 = vsub.s32 0, %v738
  %v740 = vrot.slane %v735, %v739
  %vm742 = vcmask 261120
  %v744 = vsel %vm742, %v723, 0
  %v747 = vsel %vm742, %v724, 0
  %v750 = vsel %vm742, %v725, 0
  %v753 = vsel %vm742, %v726, 0
  %v756 = vsel %vm742, %v727, 0
  %v759 = vsel %vm742, %v728, 0
  %v762 = vsel %vm742, %v729, 0
  %v765 = vsel %vm742, %v730, 0
  %767 = vmatprep.subr.mxu0 0.0
  %768 = vmatpush1.msra.mxu0 %v731
  %769 = vmatprep.subr.mxu0 0.0
  %770 = vmatpush1.msra.mxu0 %v732
  %771 = vmatprep.subr.mxu0 0.0
  %772 = vmatpush1.msra.mxu0 %v733
  %773 = vmatprep.subr.mxu0 0.0
  %774 = vmatpush1.msra.mxu0 %v734
  %775 = vmatprep.subr.mxu0 0.0
  %776 = vmatpush1.msra.mxu0 0.0
  %777 = vmatprep.subr.mxu0 0.0
  %778 = vmatpush1.msra.mxu0 0.0
  %779 = vmatprep.subr.mxu0 0.0
  %780 = vmatpush1.msra.mxu0 0.0
  %781 = vmatprep.subr.mxu0 0.0
  %782 = vmatpush1.msra.mxu0 0.0
  %783 = vmatprep.subr.mxu0 0.0
  %784 = vmatpush1.msra.mxu0 0.0
  %785 = vmatprep.subr.mxu0 0.0
  %786 = vmatpush1.msra.mxu0 0.0
  %787 = vmatprep.subr.mxu0 0.0
  %788 = vmatpush1.msra.mxu0 0.0
  %789 = vmatprep.subr.mxu0 0.0
  %790 = vmatpush1.msra.mxu0 0.0
  %791 = vmatprep.subr.mxu0 0.0
  %792 = vmatpush1.msra.mxu0 0.0
  %793 = vmatprep.subr.mxu0 0.0
  %794 = vmatpush1.msra.mxu0 0.0
  %795 = vmatprep.subr.mxu0 0.0
  %796 = vmatpush1.msra.mxu0 0.0
  %797 = vmatprep.subr.mxu0 0.0
  %798 = vmatpush1.msra.mxu0 0.0
  %799 = vmatprep.subr.mxu0 0.0
  %800 = vmatpush1.msra.mxu0 0.0
  %801 = vmatprep.subr.mxu0 0.0
  %802 = vmatpush1.msra.mxu0 0.0
  %803 = vmatprep.subr.mxu0 0.0
  %804 = vmatpush1.msra.mxu0 0.0
  %805 = vmatprep.subr.mxu0 0.0
  %806 = vmatpush1.msra.mxu0 0.0
  %807 = vmatprep.subr.mxu0 0.0
  %808 = vmatpush1.msra.mxu0 0.0
  %809 = vmatprep.subr.mxu0 0.0
  %810 = vmatpush1.msra.mxu0 0.0
  %811 = vmatprep.subr.mxu0 0.0
  %812 = vmatpush1.msra.mxu0 0.0
  %813 = vmatprep.subr.mxu0 0.0
  %814 = vmatpush1.msra.mxu0 0.0
  %815 = vmatprep.subr.mxu0 0.0
  %816 = vmatpush1.msra.mxu0 0.0
  %817 = vmatprep.subr.mxu0 0.0
  %818 = vmatpush1.msra.mxu0 0.0
  %819 = vmatprep.subr.mxu0 0.0
  %820 = vmatpush1.msra.mxu0 0.0
  %821 = vmatprep.subr.mxu0 0.0
  %822 = vmatpush1.msra.mxu0 0.0
  %823 = vmatprep.subr.mxu0 0.0
  %824 = vmatpush1.msra.mxu0 0.0
  %825 = vmatprep.subr.mxu0 0.0
  %826 = vmatpush1.msra.mxu0 0.0
  %827 = vmatprep.subr.mxu0 0.0
  %828 = vmatpush1.msra.mxu0 0.0
  %829 = vmatprep.subr.mxu0 0.0
  %830 = vmatpush1.msra.mxu0 0.0
  %831 = vmatprep.mubr.f32.mxu0 0.0
  %832 = vmatmul.mubr.f32.gmra.mrb[0].mxu0 %v744
  %v833 = vpop.f32.mrb[0].mxu0
  %v834 = vadd.f32 %v740, %v833
  %v835 = vpop.f32.mrb[0].mxu0
  %836 = vmatprep.mubr.f32.mxu0 0.0
  %837 = vmatmul.mubr.f32.gmra.mrb[0].mxu0 %v747
  %v838 = vpop.f32.mrb[0].mxu0
  %v839 = vadd.f32 %v740, %v838
  %v840 = vpop.f32.mrb[0].mxu0
  %841 = vmatprep.mubr.f32.mxu0 0.0
  %842 = vmatmul.mubr.f32.gmra.mrb[0].mxu0 %v750
  %v843 = vpop.f32.mrb[0].mxu0
  %v844 = vadd.f32 %v740, %v843
  %v845 = vpop.f32.mrb[0].mxu0
  %846 = vmatprep.mubr.f32.mxu0 0.0
  %847 = vmatmul.mubr.f32.gmra.mrb[0].mxu0 %v753
  %v848 = vpop.f32.mrb[0].mxu0
  %v849 = vadd.f32 %v740, %v848
  %v850 = vpop.f32.mrb[0].mxu0
  %851 = vmatprep.mubr.f32.mxu0 0.0
  %852 = vmatmul.mubr.f32.gmra.mrb[0].mxu0 %v756
  %v853 = vpop.f32.mrb[0].mxu0
  %v854 = vadd.f32 %v740, %v853
  %v855 = vpop.f32.mrb[0].mxu0
  %856 = vmatprep.mubr.f32.mxu0 0.0
  %857 = vmatmul.mubr.f32.gmra.mrb[0].mxu0 %v759
  %v858 = vpop.f32.mrb[0].mxu0
  %v859 = vadd.f32 %v740, %v858
  %v860 = vpop.f32.mrb[0].mxu0
  %861 = vmatprep.mubr.f32.mxu0 0.0
  %862 = vmatmul.mubr.f32.gmra.mrb[0].mxu0 %v762
  %v863 = vpop.f32.mrb[0].mxu0
  %v864 = vadd.f32 %v740, %v863
  %v865 = vpop.f32.mrb[0].mxu0
  %866 = vmatprep.mubr.f32.mxu0 0.0
  %867 = vmatmul.mubr.f32.gmra.mrb[0].mxu0 %v765
  %v868 = vpop.f32.mrb[0].mxu0
  %v869 = vadd.f32 %v740, %v868
  %v870 = vpop.f32.mrb[0].mxu0
  %871 = vdwg.mxu0
  %vm872 = vcmp.gt.f32.partialorder %v834, 0.0
  %vm873 = vcmp.gt.f32.partialorder %v839, 0.0
  %vm874 = vcmp.gt.f32.partialorder %v844, 0.0
  %vm875 = vcmp.gt.f32.partialorder %v849, 0.0
  %vm876 = vcmp.gt.f32.partialorder %v854, 0.0
  %vm877 = vcmp.gt.f32.partialorder %v859, 0.0
  %vm878 = vcmp.gt.f32.partialorder %v864, 0.0
  %vm879 = vcmp.gt.f32.partialorder %v869, 0.0
  %v880 = vmin.f32 %v834, 0.0
  %v881 = vmin.f32 %v839, 0.0
  %v882 = vmin.f32 %v844, 0.0
  %v883 = vmin.f32 %v849, 0.0
  %v884 = vmin.f32 %v854, 0.0
  %v885 = vmin.f32 %v859, 0.0
  %v886 = vmin.f32 %v864, 0.0
  %v887 = vmin.f32 %v869, 0.0
  %v888 = vmul.f32 %v880, 1.442695
  %v889 = vpow.pop %v888
  %v890 = vmul.f32 %v881, 1.442695
  %v891 = vpow.pop %v890
  %v892 = vmul.f32 %v882, 1.442695
  %v893 = vpow.pop %v892
  %v894 = vmul.f32 %v883, 1.442695
  %v895 = vpow.pop %v894
  %v896 = vmul.f32 %v884, 1.442695
  %v897 = vpow.pop %v896
  %v898 = vmul.f32 %v885, 1.442695
  %v899 = vpow.pop %v898
  %v900 = vmul.f32 %v886, 1.442695
  %v901 = vpow.pop %v900
  %v902 = vmul.f32 %v887, 1.442695
  %v903 = vpow.pop %v902
  %v904 = vsub.f32 %v889, 1.0
  %v905 = vsub.f32 %v891, 1.0
  %v906 = vsub.f32 %v893, 1.0
  %v907 = vsub.f32 %v895, 1.0
  %v908 = vsub.f32 %v897, 1.0
  %v909 = vsub.f32 %v899, 1.0
  %v910 = vsub.f32 %v901, 1.0
  %v911 = vsub.f32 %v903, 1.0
  %v912 = vmul.f32 %v904, 1.6732632
  %v913 = vmul.f32 %v905, 1.6732632
  %v914 = vmul.f32 %v906, 1.6732632
  %v915 = vmul.f32 %v907, 1.6732632
  %v916 = vmul.f32 %v908, 1.6732632
  %v917 = vmul.f32 %v909, 1.6732632
  %v918 = vmul.f32 %v910, 1.6732632
  %v919 = vmul.f32 %v911, 1.6732632
  %v920 = vsel %vm872, %v834, %v912
  %v921 = vsel %vm873, %v839, %v913
  %v922 = vsel %vm874, %v844, %v914
  %v923 = vsel %vm875, %v849, %v915
  %v924 = vsel %vm876, %v854, %v916
  %v925 = vsel %vm877, %v859, %v917
  %v926 = vsel %vm878, %v864, %v918
  %v927 = vsel %vm879, %v869, %v919
  %v928 = vmul.f32 %v920, 1.050701
  %v929 = vmul.f32 %v921, 1.050701
  %v930 = vmul.f32 %v922, 1.050701
  %v931 = vmul.f32 %v923, 1.050701
  %v932 = vmul.f32 %v924, 1.050701
  %v933 = vmul.f32 %v925, 1.050701
  %v934 = vmul.f32 %v926, 1.050701
  %v935 = vmul.f32 %v927, 1.050701
  %v936 = vld [vmem:[%s10] sm:$0xff]
  %v937 = vld [vmem:[%s10 + $0x8] sm:$0xff]
  %v938 = vld [vmem:[%s10 + $0x10] sm:$0xff]
  %v939 = vld [vmem:[%s10 + $0x18] sm:$0xff]
  %v940 = vld [vmem:[%s11] sm:$0x1]
  %v942 = vlaneseq
  %v943 = vshrl.u32 %v942, 7
  %v944 = vsub.s32 0, %v943
  %v945 = vrot.slane %v940, %v944
  %v948 = vsel %vm742, %v928, 0
  %v951 = vsel %vm742, %v929, 0
  %v954 = vsel %vm742, %v930, 0
  %v957 = vsel %vm742, %v931, 0
  %v960 = vsel %vm742, %v932, 0
  %v963 = vsel %vm742, %v933, 0
  %v966 = vsel %vm742, %v934, 0
  %v969 = vsel %vm742, %v935, 0
  %971 = vmatprep.subr.mxu0 0.0
  %972 = vmatpush1.msra.mxu0 %v936
  %973 = vmatprep.subr.mxu0 0.0
  %974 = vmatpush1.msra.mxu0 %v937
  %975 = vmatprep.subr.mxu0 0.0
  %976 = vmatpush1.msra.mxu0 %v938
  %977 = vmatprep.subr.mxu0 0.0
  %978 = vmatpush1.msra.mxu0 %v939
  %979 = vmatprep.subr.mxu0 0.0
  %980 = vmatpush1.msra.mxu0 0.0
  %981 = vmatprep.subr.mxu0 0.0
  %982 = vmatpush1.msra.mxu0 0.0
  %983 = vmatprep.subr.mxu0 0.0
  %984 = vmatpush1.msra.mxu0 0.0
  %985 = vmatprep.subr.mxu0 0.0
  %986 = vmatpush1.msra.mxu0 0.0
  %987 = vmatprep.subr.mxu0 0.0
  %988 = vmatpush1.msra.mxu0 0.0
  %989 = vmatprep.subr.mxu0 0.0
  %990 = vmatpush1.msra.mxu0 0.0
  %991 = vmatprep.subr.mxu0 0.0
  %992 = vmatpush1.msra.mxu0 0.0
  %993 = vmatprep.subr.mxu0 0.0
  %994 = vmatpush1.msra.mxu0 0.0
  %995 = vmatprep.subr.mxu0 0.0
  %996 = vmatpush1.msra.mxu0 0.0
  %997 = vmatprep.subr.mxu0 0.0
  %998 = vmatpush1.msra.mxu0 0.0
  %999 = vmatprep.subr.mxu0 0.0
  %1000 = vmatpush1.msra.mxu0 0.0
  %1001 = vmatprep.subr.mxu0 0.0
  %1002 = vmatpush1.msra.mxu0 0.0
  %1003 = vmatprep.subr.mxu0 0.0
  %1004 = vmatpush1.msra.mxu0 0.0
  %1005 = vmatprep.subr.mxu0 0.0
  %1006 = vmatpush1.msra.mxu0 0.0
  %1007 = vmatprep.subr.mxu0 0.0
  %1008 = vmatpush1.msra.mxu0 0.0
  %1009 = vmatprep.subr.mxu0 0.0
  %1010 = vmatpush1.msra.mxu0 0.0
  %1011 = vmatprep.subr.mxu0 0.0
  %1012 = vmatpush1.msra.mxu0 0.0
  %1013 = vmatprep.subr.mxu0 0.0
  %1014 = vmatpush1.msra.mxu0 0.0
  %1015 = vmatprep.subr.mxu0 0.0
  %1016 = vmatpush1.msra.mxu0 0.0
  %1017 = vmatprep.subr.mxu0 0.0
  %1018 = vmatpush1.msra.mxu0 0.0
  %1019 = vmatprep.subr.mxu0 0.0
  %1020 = vmatpush1.msra.mxu0 0.0
  %1021 = vmatprep.subr.mxu0 0.0
  %1022 = vmatpush1.msra.mxu0 0.0
  %1023 = vmatprep.subr.mxu0 0.0
  %1024 = vmatpush1.msra.mxu0 0.0
  %1025 = vmatprep.subr.mxu0 0.0
  %1026 = vmatpush1.msra.mxu0 0.0
  %1027 = vmatprep.subr.mxu0 0.0
  %1028 = vmatpush1.msra.mxu0 0.0
  %1029 = vmatprep.subr.mxu0 0.0
  %1030 = vmatpush1.msra.mxu0 0.0
  %1031 = vmatprep.subr.mxu0 0.0
  %1032 = vmatpush1.msra.mxu0 0.0
  %1033 = vmatprep.subr.mxu0 0.0
  %1034 = vmatpush1.msra.mxu0 0.0
  %1035 = vmatprep.mubr.f32.mxu0 0.0
  %1036 = vmatmul.mubr.f32.gmra.mrb[0].mxu0 %v948
  %v1037 = vpop.f32.mrb[0].mxu0
  %v1038 = vadd.f32 %v945, %v1037
  %v1039 = vpop.f32.mrb[0].mxu0
  %1040 = vmatprep.mubr.f32.mxu0 0.0
  %1041 = vmatmul.mubr.f32.gmra.mrb[0].mxu0 %v951
  %v1042 = vpop.f32.mrb[0].mxu0
  %v1043 = vadd.f32 %v945, %v1042
  %v1044 = vpop.f32.mrb[0].mxu0
  %1045 = vmatprep.mubr.f32.mxu0 0.0
  %1046 = vmatmul.mubr.f32.gmra.mrb[0].mxu0 %v954
  %v1047 = vpop.f32.mrb[0].mxu0
  %v1048 = vadd.f32 %v945, %v1047
  %v1049 = vpop.f32.mrb[0].mxu0
  %1050 = vmatprep.mubr.f32.mxu0 0.0
  %1051 = vmatmul.mubr.f32.gmra.mrb[0].mxu0 %v957
  %v1052 = vpop.f32.mrb[0].mxu0
  %v1053 = vadd.f32 %v945, %v1052
  %v1054 = vpop.f32.mrb[0].mxu0
  %1055 = vmatprep.mubr.f32.mxu0 0.0
  %1056 = vmatmul.mubr.f32.gmra.mrb[0].mxu0 %v960
  %v1057 = vpop.f32.mrb[0].mxu0
  %v1058 = vadd.f32 %v945, %v1057
  %v1059 = vpop.f32.mrb[0].mxu0
  %1060 = vmatprep.mubr.f32.mxu0 0.0
  %1061 = vmatmul.mubr.f32.gmra.mrb[0].mxu0 %v963
  %v1062 = vpop.f32.mrb[0].mxu0
  %v1063 = vadd.f32 %v945, %v1062
  %v1064 = vpop.f32.mrb[0].mxu0
  %1065 = vmatprep.mubr.f32.mxu0 0.0
  %1066 = vmatmul.mubr.f32.gmra.mrb[0].mxu0 %v966
  %v1067 = vpop.f32.mrb[0].mxu0
  %v1068 = vadd.f32 %v945, %v1067
  %v1069 = vpop.f32.mrb[0].mxu0
  %1070 = vmatprep.mubr.f32.mxu0 0.0
  %1071 = vmatmul.mubr.f32.gmra.mrb[0].mxu0 %v969
  %v1072 = vpop.f32.mrb[0].mxu0
  %v1073 = vadd.f32 %v945, %v1072
  %v1074 = vpop.f32.mrb[0].mxu0
  %1075 = vdwg.mxu0
  %1076 = vst.msk [vmem:[%s12] sm:$0xff] %vm101, %v1038
  %1077 = vst.msk [vmem:[%s12 + $0x8] sm:$0xff] %vm101, %v1043
  %1078 = vst.msk [vmem:[%s12 + $0x10] sm:$0xff] %vm101, %v1048
  %1079 = vst.msk [vmem:[%s12 + $0x18] sm:$0xff] %vm101, %v1053
  %1080 = vst.msk [vmem:[%s12 + $0x20] sm:$0xff] %vm101, %v1058
  %1081 = vst.msk [vmem:[%s12 + $0x28] sm:$0xff] %vm101, %v1063
  %1082 = vst.msk [vmem:[%s12 + $0x30] sm:$0xff] %vm101, %v1068
  %1083 = vst.msk [vmem:[%s12 + $0x38] sm:$0xff] %vm101, %v1073
  // Predicated region
  $region50: #{tpu_custom_call.1} parent=0 // pred_check
    _
  $region51: #{tpu_custom_call.1} parent=0 // pred_check_branch
    %1085 = sbr.rel (0) target = $region53
  $region52: #{tpu_custom_call.1} parent=0 // pred_region
    _
  $region53: #{tpu_custom_call.1} parent=0 // pred_fallthru
    _
  // Predicated region
  $region54: #{tpu_custom_call.1} parent=0 // pred_check
    _
  $region55: #{tpu_custom_call.1} parent=0 // pred_check_branch
    %1087 = sbr.rel (0) target = $region57
  $region56: #{tpu_custom_call.1} parent=0 // pred_region
    _
  $region57: #{tpu_custom_call.1} parent=0 // pred_fallthru
    _

</llo_original>
